<compile_context>
chip_gen: v6e
topology: v6e:2x2x1
jax: 0.10.0
libtpu: 0.0.40
codegen_flags: <defaults>
</compile_context>

<pallas_src>
import functools

import jax
import jax.numpy as jnp
from jax.experimental import pallas as pl
from jax.experimental.pallas import tpu as pltpu

LANES = 128
SUBLANE_MULT = 32                      # row-block multiple: covers f32(8)/bf16(16) tiling
TARGET_BLOCK_BYTES = 2 * 1024 * 1024   # per input, per grid step
VMEM_LIMIT_BYTES = 32 * 1024 * 1024    # 4 inputs x 2 buffers x 2 MiB = 16 MiB < 32 MiB
_KEEP_DTYPES = ("float32", "bfloat16")


def _canon2d(x):
    """Zero-copy 2-D (R, C) view: contiguous reshapes only (no HBM copy)."""
    if x.dtype.name not in _KEEP_DTYPES:
        x = x.astype(jnp.float32)
    n = x.size
    if x.ndim >= 2 and x.shape[-1] >= 8:
        return x.reshape(-1, x.shape[-1])
    if n % LANES == 0:
        return x.reshape(-1, LANES)
    # TODO(synk): pathological huge 0/1-D inputs with odd sizes land in a
    # single (1, n) block; add column blocking if that ever matters.
    return x.reshape(1, n)


def _row_block(R, C, itemsize, target):
    """Rows per block: full R if it fits, else a multiple of 32 near `target` bytes."""
    rows = max(1, target // (C * itemsize))
    if rows >= R:
        return R
    rows = max(SUBLANE_MULT, (rows // SUBLANE_MULT) * SUBLANE_MULT)
    # TODO(synk): if a single 32-row block of a very wide matrix exceeds VMEM,
    # column blocking would be needed; realistic loss inputs are far smaller.
    return min(rows, R)


def _make_kernel(spec_r, spec_k):
    R_r, C_r, BR_r, NB_r, SB_r, mask_r = spec_r
    R_k, C_k, BR_k, NB_k, SB_k, mask_k = spec_k

    def kernel(y_ref, yhat_ref, mu_ref, sig_ref, r_out, k_out):
        c = pl.program_id(0)   # core split          ("parallel")
        i = pl.program_id(1)   # streaming step      ("arbitrary")

        @pl.when(i == 0)
        def _init():
            r_out[...] = jnp.zeros_like(r_out)
            k_out[...] = jnp.zeros_like(k_out)

        # ---- reconstruction stream: sum((y_hat - y)^2) ----
        j_r = c * SB_r + i
        @pl.when(jnp.logical_and(i < SB_r, j_r < NB_r))
        def _recon():
            d = yhat_ref[...].astype(jnp.float32) - y_ref[...].astype(jnp.float32)
            t = d * d
            if mask_r:  # last block of the stream may be partial
                rows = jax.lax.broadcasted_iota(jnp.int32, (BR_r, C_r), 0)
                t = jnp.where(rows < (R_r - j_r * BR_r), t, 0.0)
            # rows-only reduce: VPU adds + one sublane collapse; no per-step
            # full cross-lane reduce. Accumulator stays lane-dense (1,1,C).
            r_out[...] += jnp.sum(t, axis=0, keepdims=True)[None]

        # ---- KL stream: sum(0.5*(sig^2 + mu^2) - log(sig)); the "-0.5"
        #      per element is folded into a scalar correction in XLA. ----
        j_k = c * SB_k + i
        @pl.when(jnp.logical_and(i < SB_k, j_k < NB_k))
        def _kld():
            mu = mu_ref[...].astype(jnp.float32)
            sg = sig_ref[...].astype(jnp.float32)
            t = 0.5 * (sg * sg + mu * mu) - jnp.log(sg)
            if mask_k:
                rows = jax.lax.broadcasted_iota(jnp.int32, (BR_k, C_k), 0)
                t = jnp.where(rows < (R_k - j_k * BR_k), t, 0.0)
            k_out[...] += jnp.sum(t, axis=0, keepdims=True)[None]

    return kernel


@functools.partial(jax.jit, static_argnames=("scale", "gamma", "block_bytes"))
def objective_loss(y, y_hat, mu_posterior, sigma_posterior,
                   scale=100.0, gamma=0.99, block_bytes=TARGET_BLOCK_BYTES):
    del gamma  # stored by the PyTorch module but unused in its forward()
    assert y.shape == y_hat.shape, "y / y_hat shape mismatch"
    assert mu_posterior.shape == sigma_posterior.shape, "mu / sigma shape mismatch"

    y2, yh2 = _canon2d(y), _canon2d(y_hat)
    mu2, sg2 = _canon2d(mu_posterior), _canon2d(sigma_posterior)

    R_r, C_r = y2.shape
    it_r = max(y2.dtype.itemsize, yh2.dtype.itemsize)
    BR_r = _row_block(R_r, C_r, it_r, block_bytes)
    NB_r = pl.cdiv(R_r, BR_r)
    mask_r = (R_r % BR_r) != 0

    R_k, C_k = mu2.shape
    it_k = max(mu2.dtype.itemsize, sg2.dtype.itemsize)
    BR_k = _row_block(R_k, C_k, it_k, block_bytes)
    NB_k = pl.cdiv(R_k, BR_k)
    mask_k = (R_k % BR_k) != 0

    # 2-way split only when there is real work (no-op on 1-TC chips; up to 2x
    # aggregate HBM streaming if it shards across v7x's two TensorCores).
    num_splits = 2 if max(NB_r, NB_k) >= 8 else 1
    SB_r = pl.cdiv(NB_r, num_splits)
    SB_k = pl.cdiv(NB_k, num_splits)
    steps = max(SB_r, SB_k)

    kernel = _make_kernel((R_r, C_r, BR_r, NB_r, SB_r, mask_r),
                          (R_k, C_k, BR_k, NB_k, SB_k, mask_k))

    rmap = lambda c, i: (jnp.minimum(c * SB_r + i, NB_r - 1), 0)
    kmap = lambda c, i: (jnp.minimum(c * SB_k + i, NB_k - 1), 0)

    r_parts, k_parts = pl.pallas_call(
        kernel,
        out_shape=(jax.ShapeDtypeStruct((num_splits, 1, C_r), jnp.float32),
                   jax.ShapeDtypeStruct((num_splits, 1, C_k), jnp.float32)),
        grid_spec=pltpu.PrefetchScalarGridSpec(
            num_scalar_prefetch=0,
            grid=(num_splits, steps),
            in_specs=[
                pl.BlockSpec((BR_r, C_r), rmap),
                pl.BlockSpec((BR_r, C_r), rmap),
                pl.BlockSpec((BR_k, C_k), kmap),
                pl.BlockSpec((BR_k, C_k), kmap),
            ],
            out_specs=[
                pl.BlockSpec((1, 1, C_r), lambda c, i: (c, 0, 0)),
                pl.BlockSpec((1, 1, C_k), lambda c, i: (c, 0, 0)),
            ],
        ),
        compiler_params=pltpu.CompilerParams(
            dimension_semantics=("parallel", "arbitrary"),
            vmem_limit_bytes=VMEM_LIMIT_BYTES,
        ),
    )(y2, yh2, mu2, sg2)

    recon_loss = jnp.sum(r_parts) * (scale / y.size)
    kld_loss = jnp.sum(k_parts) - 0.5 * mu_posterior.size
    return recon_loss + kld_loss, recon_loss, kld_loss


def _reference(y, y_hat, mu, sig, scale=100.0):
    yf, yhf = y.astype(jnp.float32), y_hat.astype(jnp.float32)
    muf, sgf = mu.astype(jnp.float32), sig.astype(jnp.float32)
    recon = scale * jnp.mean((yhf - yf) ** 2)
    kld = jnp.sum(-jnp.log(sgf) + (sgf ** 2 + muf ** 2) / 2.0 - 0.5)
    return recon + kld, recon, kld


if __name__ == "__main__":
    key = jax.random.PRNGKey(0)

    # --- case 1: module-typical small shapes (batch, n_stocks / n_factors) ---
    k1, k2, k3, k4 = jax.random.split(key, 4)
    batch, n_stocks, n_factors = 2, 64, 32
    y = jax.random.normal(k1, (batch, n_stocks), dtype=jnp.float32)
    y_hat = jax.random.normal(k2, (batch, n_stocks), dtype=jnp.float32)
    mu_post = jax.random.normal(k3, (batch, n_factors), dtype=jnp.float32)
    sig_post = jax.nn.softplus(
        jax.random.normal(k4, (batch, n_factors), dtype=jnp.float32))

    total, recon, kld = objective_loss(y, y_hat, mu_post, sig_post)
    total = jax.block_until_ready(total)
    t_ref, r_ref, k_ref = _reference(y, y_hat, mu_post, sig_post)
    assert jnp.allclose(recon, r_ref, rtol=1e-5, atol=1e-4), (recon, r_ref)
    assert jnp.allclose(kld, k_ref, rtol=1e-5, atol=1e-4), (kld, k_ref)
    assert jnp.allclose(total, t_ref, rtol=1e-5, atol=1e-4), (total, t_ref)

    # --- case 2: exercises tiling, ragged-block masking, the 2-way split,
    #     uneven stream lengths, and the bf16 in-kernel upcast path ---
    k5, k6, k7, k8 = jax.random.split(jax.random.PRNGKey(1), 4)
    y2 = jax.random.normal(k5, (250, 96), dtype=jnp.bfloat16)
    yh2 = jax.random.normal(k6, (250, 96), dtype=jnp.bfloat16)
    mu2 = jax.random.normal(k7, (100, 24), dtype=jnp.float32)
    sg2 = jax.nn.softplus(jax.random.normal(k8, (100, 24), dtype=jnp.float32))

    total2, recon2, kld2 = objective_loss(y2, yh2, mu2, sg2, block_bytes=4096)
    total2 = jax.block_until_ready(total2)
    t2_ref, r2_ref, k2_ref = _reference(y2, yh2, mu2, sg2)
    assert jnp.allclose(recon2, r2_ref, rtol=1e-4, atol=1e-2), (recon2, r2_ref)
    assert jnp.allclose(kld2, k2_ref, rtol=1e-4, atol=1e-2), (kld2, k2_ref)
    assert jnp.allclose(total2, t2_ref, rtol=1e-4, atol=1e-2), (total2, t2_ref)

    print("KERNEL_OK")
</pallas_src>

<mosaic_0001>
module attributes {stable_mosaic.version = 11 : i64} {
  func.func @kernel(%arg0: i32, %arg1: i32, %arg2: memref<2x64xf32, #tpu.memory_space<vmem>>, %arg3: memref<2x64xf32, #tpu.memory_space<vmem>>, %arg4: memref<2x32xf32, #tpu.memory_space<vmem>>, %arg5: memref<2x32xf32, #tpu.memory_space<vmem>>, %arg6: memref<1x1x64xf32, #tpu.memory_space<vmem>>, %arg7: memref<1x1x32xf32, #tpu.memory_space<vmem>>) attributes {dimension_semantics = [#tpu.dimension_semantics<parallel>, #tpu.dimension_semantics<arbitrary>], iteration_bounds = array<i64: 1, 1>, scalar_prefetch = 0 : i64, scratch_operands = 0 : i64, tpu.core_type = #tpu.core_type<tc>, window_params = [{transform_indices = @transform_0, window_bounds = array<i64: 2, 64>}, {transform_indices = @transform_1, window_bounds = array<i64: 2, 64>}, {transform_indices = @transform_2, window_bounds = array<i64: 2, 32>}, {transform_indices = @transform_3, window_bounds = array<i64: 2, 32>}, {transform_indices = @transform_4, window_bounds = array<i64: 1, 1, 64>}, {transform_indices = @transform_5, window_bounds = array<i64: 1, 1, 32>}]} {
    %c0_i32 = arith.constant 0 : i32
    %0 = arith.cmpi eq, %arg1, %c0_i32 : i32
    %1 = arith.extui %0 : i1 to i32
    %c0_i32_0 = arith.constant 0 : i32
    %2 = arith.cmpi ne, %1, %c0_i32_0 : i32
    scf.if %2 {
      %cst = arith.constant 0.000000e+00 : f32
      %17 = vector.broadcast %cst : f32 to vector<1x1x64xf32>
      %c0 = arith.constant 0 : index
      %c0_8 = arith.constant 0 : index
      %c0_9 = arith.constant 0 : index
      %18 = vector.load %arg6[%c0, %c0_8, %c0_9] : memref<1x1x64xf32, #tpu.memory_space<vmem>>, vector<1x1x64xf32>
      tpu.vector_store %arg6[%c0, %c0_8, %c0_9], %17 {strides = array<i32>} : memref<1x1x64xf32, #tpu.memory_space<vmem>>, vector<1x1x64xf32>,
      %cst_10 = arith.constant 0.000000e+00 : f32
      %19 = vector.broadcast %cst_10 : f32 to vector<1x1x32xf32>
      %c0_11 = arith.constant 0 : index
      %c0_12 = arith.constant 0 : index
      %c0_13 = arith.constant 0 : index
      %20 = vector.load %arg7[%c0_11, %c0_12, %c0_13] : memref<1x1x32xf32, #tpu.memory_space<vmem>>, vector<1x1x32xf32>
      tpu.vector_store %arg7[%c0_11, %c0_12, %c0_13], %19 {strides = array<i32>} : memref<1x1x32xf32, #tpu.memory_space<vmem>>, vector<1x1x32xf32>,
    } else {
    }
    %c1_i32 = arith.constant 1 : i32
    %3 = arith.muli %arg0, %c1_i32 : i32
    %4 = arith.addi %3, %arg1 : i32
    %c1_i32_1 = arith.constant 1 : i32
    %5 = arith.cmpi slt, %arg1, %c1_i32_1 : i32
    %c1_i32_2 = arith.constant 1 : i32
    %6 = arith.cmpi slt, %4, %c1_i32_2 : i32
    %7 = arith.andi %5, %6 : i1
    %8 = arith.extui %7 : i1 to i32
    %c0_i32_3 = arith.constant 0 : i32
    %9 = arith.cmpi ne, %8, %c0_i32_3 : i32
    scf.if %9 {
      %c0 = arith.constant 0 : index
      %c0_8 = arith.constant 0 : index
      %17 = vector.load %arg3[%c0, %c0_8] : memref<2x64xf32, #tpu.memory_space<vmem>>, vector<2x64xf32>
      %c0_9 = arith.constant 0 : index
      %c0_10 = arith.constant 0 : index
      %18 = vector.load %arg2[%c0_9, %c0_10] : memref<2x64xf32, #tpu.memory_space<vmem>>, vector<2x64xf32>
      %19 = arith.subf %17, %18 : vector<2x64xf32>
      %20 = arith.mulf %19, %19 : vector<2x64xf32>
      %c0_11 = arith.constant 0 : index
      %c0_12 = arith.constant 0 : index
      %c0_13 = arith.constant 0 : index
      %21 = vector.load %arg6[%c0_11, %c0_12, %c0_13] : memref<1x1x64xf32, #tpu.memory_space<vmem>>, vector<1x1x64xf32>
      %cst = arith.constant dense<0.000000e+00> : vector<64xf32>
      %22 = vector.multi_reduction <add>, %20, %cst [0] : vector<2x64xf32> to vector<64xf32>
      %23 = vector.shape_cast %22 : vector<64xf32> to vector<1x64xf32>
      %24 = vector.shape_cast %23 : vector<1x64xf32> to vector<1x1x64xf32>
      %25 = arith.addf %21, %24 : vector<1x1x64xf32>
      %c0_14 = arith.constant 0 : index
      %c0_15 = arith.constant 0 : index
      %c0_16 = arith.constant 0 : index
      %26 = vector.load %arg6[%c0_14, %c0_15, %c0_16] : memref<1x1x64xf32, #tpu.memory_space<vmem>>, vector<1x1x64xf32>
      tpu.vector_store %arg6[%c0_14, %c0_15, %c0_16], %25 {strides = array<i32>} : memref<1x1x64xf32, #tpu.memory_space<vmem>>, vector<1x1x64xf32>,
    } else {
    }
    %c1_i32_4 = arith.constant 1 : i32
    %10 = arith.muli %arg0, %c1_i32_4 : i32
    %11 = arith.addi %10, %arg1 : i32
    %c1_i32_5 = arith.constant 1 : i32
    %12 = arith.cmpi slt, %arg1, %c1_i32_5 : i32
    %c1_i32_6 = arith.constant 1 : i32
    %13 = arith.cmpi slt, %11, %c1_i32_6 : i32
    %14 = arith.andi %12, %13 : i1
    %15 = arith.extui %14 : i1 to i32
    %c0_i32_7 = arith.constant 0 : i32
    %16 = arith.cmpi ne, %15, %c0_i32_7 : i32
    scf.if %16 {
      %c0 = arith.constant 0 : index
      %c0_8 = arith.constant 0 : index
      %17 = vector.load %arg4[%c0, %c0_8] : memref<2x32xf32, #tpu.memory_space<vmem>>, vector<2x32xf32>
      %c0_9 = arith.constant 0 : index
      %c0_10 = arith.constant 0 : index
      %18 = vector.load %arg5[%c0_9, %c0_10] : memref<2x32xf32, #tpu.memory_space<vmem>>, vector<2x32xf32>
      %19 = arith.mulf %18, %18 : vector<2x32xf32>
      %20 = arith.mulf %17, %17 : vector<2x32xf32>
      %21 = arith.addf %19, %20 : vector<2x32xf32>
      %cst = arith.constant 5.000000e-01 : f32
      %22 = vector.broadcast %cst : f32 to vector<2x32xf32>
      %23 = arith.mulf %22, %21 : vector<2x32xf32>
      %24 = math.log %18 : vector<2x32xf32>
      %25 = arith.subf %23, %24 : vector<2x32xf32>
      %c0_11 = arith.constant 0 : index
      %c0_12 = arith.constant 0 : index
      %c0_13 = arith.constant 0 : index
      %26 = vector.load %arg7[%c0_11, %c0_12, %c0_13] : memref<1x1x32xf32, #tpu.memory_space<vmem>>, vector<1x1x32xf32>
      %cst_14 = arith.constant dense<0.000000e+00> : vector<32xf32>
      %27 = vector.multi_reduction <add>, %25, %cst_14 [0] : vector<2x32xf32> to vector<32xf32>
      %28 = vector.shape_cast %27 : vector<32xf32> to vector<1x32xf32>
      %29 = vector.shape_cast %28 : vector<1x32xf32> to vector<1x1x32xf32>
      %30 = arith.addf %26, %29 : vector<1x1x32xf32>
      %c0_15 = arith.constant 0 : index
      %c0_16 = arith.constant 0 : index
      %c0_17 = arith.constant 0 : index
      %31 = vector.load %arg7[%c0_15, %c0_16, %c0_17] : memref<1x1x32xf32, #tpu.memory_space<vmem>>, vector<1x1x32xf32>
      tpu.vector_store %arg7[%c0_15, %c0_16, %c0_17], %30 {strides = array<i32>} : memref<1x1x32xf32, #tpu.memory_space<vmem>>, vector<1x1x32xf32>,
    } else {
    }
    return
  }
  func.func @transform_0(%arg0: i32, %arg1: i32) -> (i32, i32) {
    %c1_i32 = arith.constant 1 : i32
    %0 = arith.muli %arg0, %c1_i32 : i32
    %1 = arith.addi %0, %arg1 : i32
    %c0_i32 = arith.constant 0 : i32
    %2 = arith.minsi %1, %c0_i32 : i32
    %c0_i32_0 = arith.constant 0 : i32
    %c0_i32_1 = arith.constant 0 : i32
    return %2, %c0_i32_0 : i32, i32
  }
  func.func @transform_1(%arg0: i32, %arg1: i32) -> (i32, i32) {
    %c1_i32 = arith.constant 1 : i32
    %0 = arith.muli %arg0, %c1_i32 : i32
    %1 = arith.addi %0, %arg1 : i32
    %c0_i32 = arith.constant 0 : i32
    %2 = arith.minsi %1, %c0_i32 : i32
    %c0_i32_0 = arith.constant 0 : i32
    %c0_i32_1 = arith.constant 0 : i32
    return %2, %c0_i32_0 : i32, i32
  }
  func.func @transform_2(%arg0: i32, %arg1: i32) -> (i32, i32) {
    %c1_i32 = arith.constant 1 : i32
    %0 = arith.muli %arg0, %c1_i32 : i32
    %1 = arith.addi %0, %arg1 : i32
    %c0_i32 = arith.constant 0 : i32
    %2 = arith.minsi %1, %c0_i32 : i32
    %c0_i32_0 = arith.constant 0 : i32
    %c0_i32_1 = arith.constant 0 : i32
    return %2, %c0_i32_0 : i32, i32
  }
  func.func @transform_3(%arg0: i32, %arg1: i32) -> (i32, i32) {
    %c1_i32 = arith.constant 1 : i32
    %0 = arith.muli %arg0, %c1_i32 : i32
    %1 = arith.addi %0, %arg1 : i32
    %c0_i32 = arith.constant 0 : i32
    %2 = arith.minsi %1, %c0_i32 : i32
    %c0_i32_0 = arith.constant 0 : i32
    %c0_i32_1 = arith.constant 0 : i32
    return %2, %c0_i32_0 : i32, i32
  }
  func.func @transform_4(%arg0: i32, %arg1: i32) -> (i32, i32, i32) {
    %c0_i32 = arith.constant 0 : i32
    %c0_i32_0 = arith.constant 0 : i32
    %c0_i32_1 = arith.constant 0 : i32
    return %arg0, %c0_i32, %c0_i32_0 : i32, i32, i32
  }
  func.func @transform_5(%arg0: i32, %arg1: i32) -> (i32, i32, i32) {
    %c0_i32 = arith.constant 0 : i32
    %c0_i32_0 = arith.constant 0 : i32
    %c0_i32_1 = arith.constant 0 : i32
    return %arg0, %c0_i32, %c0_i32_0 : i32, i32, i32
  }
}

</mosaic_0001>

<llo_original>
// kernel: objective_loss.1
$region0: #{objective_loss.1}
  #allocation0 [shape = 'u32[]', space=smem, size = 0x4, offset = 0x4, fixed_abs, tag = 'smem constant byte address 0x4 - core index']
  #allocation1 [shape = 'u32[144,128]{1,0:T(1,128)}', space=vmem, size = 0x12000, scoped, tag = 'internal scratch']
  %s0 = inlined_call_operand.hbm [shape: f32[2,64], index: 0, kind: input, shape index: {}]
  %s1 = inlined_call_operand.hbm [shape: f32[2,64], index: 1, kind: input, shape index: {}]
  %s2 = inlined_call_operand.vmem [shape: f32[2,32], index: 2, kind: input, shape index: {}]
  %s3 = inlined_call_operand.vmem [shape: f32[2,32], index: 3, kind: input, shape index: {}]
  %s4 = inlined_call_operand.vmem [shape: f32[1,1,64], index: 4, kind: output, shape index: {0}]
  %s5 = inlined_call_operand.vmem [shape: f32[1,1,32], index: 5, kind: output, shape index: {1}]
  %6 = xla_tuple %s4, %s5
  %s7 = sld [smem:[#allocation0]]
  $region50: #{objective_loss.1} parent=0
    _
  %s9 = ssub.s32 1, %s7
  %s10 = scalar_select 0, %s9, %s7
  $region1: #{objective_loss.1} parent=0
    #allocation2 [shape = 'u8[1024]{0}', space=vmem, size = 0x400, scoped, tag = 'input window, operand 0, single buffered']
    #allocation3 [shape = 's32[1]{0}', space=sflag, size = 0x4, scoped, tag = 'scoped memory for objective_loss.1']
    #allocation4 [shape = 'u8[1024]{0}', space=vmem, size = 0x400, scoped, tag = 'input window, operand 1, single buffered']
    #allocation5 [shape = 's32[1]{0}', space=sflag, size = 0x4, scoped, tag = 'scoped memory for objective_loss.1']
    %11 = vsyncpa [#allocation3], 0
    %12 = vsyncpa [#allocation5], 0
    // Predicated region
    $region2: #{objective_loss.1} parent=1 // pred_check
      _
    $region3: #{objective_loss.1} parent=1 // pred_check_branch
      %14 = sbr.rel (0) target = $region5
    $region4: #{objective_loss.1} parent=1 // pred_region
      %s15 = sadd.s32 0, 0
      %p16 = scmp.lt.s32.totalorder %s15, 0
      %s17 = scalar_select %p16, %s15, 0
      %s19 = ssub.s32 32, 32
      %20 = vsyncadd [#allocation3], %s19
      %s21 = smul.addr %s17, 32
      %s22 = scalar_lea.hbm %s0, %s21
      %s24 = sshll.u32 [#allocation2], 4
      %s25 = int_to_ptr.vmem [resolvable:$true] %s24
      %27 = dma.hbm_to_vmem [thread:$0]  %s22, 32, %s25, [#allocation3]
    $region5: #{objective_loss.1} parent=1 // pred_fallthru
      _
    // Predicated region
    $region6: #{objective_loss.1} parent=1 // pred_check
      _
    $region7: #{objective_loss.1} parent=1 // pred_check_branch
      %29 = sbr.rel (0) target = $region9
    $region8: #{objective_loss.1} parent=1 // pred_region
      %s30 = sadd.s32 0, 0
      %p31 = scmp.lt.s32.totalorder %s30, 0
      %s32 = scalar_select %p31, %s30, 0
      %s34 = ssub.s32 32, 32
      %35 = vsyncadd [#allocation5], %s34
      %s36 = smul.addr %s32, 32
      %s37 = scalar_lea.hbm %s1, %s36
      %s39 = sshll.u32 [#allocation4], 4
      %s40 = int_to_ptr.vmem [resolvable:$true] %s39
      %42 = dma.hbm_to_vmem [thread:$0]  %s37, 32, %s40, [#allocation5]
    $region9: #{objective_loss.1} parent=1 // pred_fallthru
      _
    // Predicated region
    $region10: #{objective_loss.1} parent=1 // pred_check
      _
    $region11: #{objective_loss.1} parent=1 // pred_check_branch
      %44 = sbr.rel (0) target = $region13
    $region12: #{objective_loss.1} parent=1 // pred_region
      %s45 = sadd.s32 0, 0
      %p46 = scmp.lt.s32.totalorder %s45, 0
      %s47 = scalar_select %p46, %s45, 0
      %p48 = scmp.lt.s32.totalorder %s47, 0
      %s49 = scalar_select %p48, %s47, 0
      %s50 = smul.addr %s49, 2
      %s51 = scalar_lea.vmem %s2, %s50
      %s52 = sadd.s32 0, 0
      %p53 = scmp.lt.s32.totalorder %s52, 0
      %s54 = scalar_select %p53, %s52, 0
    $region13: #{objective_loss.1} parent=1 // pred_fallthru
      _
    // Predicated region
    $region14: #{objective_loss.1} parent=1 // pred_check
      _
    $region15: #{objective_loss.1} parent=1 // pred_check_branch
      %56 = sbr.rel (0) target = $region17
    $region16: #{objective_loss.1} parent=1 // pred_region
      %s57 = sadd.s32 0, 0
      %p58 = scmp.lt.s32.totalorder %s57, 0
      %s59 = scalar_select %p58, %s57, 0
      %p60 = scmp.lt.s32.totalorder %s59, 0
      %s61 = scalar_select %p60, %s59, 0
      %s62 = smul.addr %s61, 2
      %s63 = scalar_lea.vmem %s3, %s62
      %s64 = sadd.s32 0, 0
      %p65 = scmp.lt.s32.totalorder %s64, 0
      %s66 = scalar_select %p65, %s64, 0
    $region17: #{objective_loss.1} parent=1 // pred_fallthru
      _
    // Predicated region
    $region18: #{objective_loss.1} parent=1 // pred_check
      _
    $region19: #{objective_loss.1} parent=1 // pred_check_branch
      %68 = sbr.rel (0) target = $region21
    $region20: #{objective_loss.1} parent=1 // pred_region
      %69 = dma.done [#allocation3], 32
    $region21: #{objective_loss.1} parent=1 // pred_fallthru
      _
    // Predicated region
    $region22: #{objective_loss.1} parent=1 // pred_check
      _
    $region23: #{objective_loss.1} parent=1 // pred_check_branch
      %71 = sbr.rel (0) target = $region25
    $region24: #{objective_loss.1} parent=1 // pred_region
      %72 = dma.done [#allocation5], 32
    $region25: #{objective_loss.1} parent=1 // pred_fallthru
      _
    %s73 = sadd.s32 0, 0
    %p74 = scmp.lt.s32.totalorder %s73, 0
    %s75 = scalar_select %p74, %s73, 0
    %p76 = scmp.lt.s32.totalorder %s75, 0
    %s77 = scalar_select %p76, %s75, 0
    %s78 = smul.addr %s77, 2
    %s79 = scalar_lea.vmem %s2, %s78
    %s80 = sadd.s32 0, 0
    %p81 = scmp.lt.s32.totalorder %s80, 0
    %s82 = scalar_select %p81, %s80, 0
    %p83 = scmp.lt.s32.totalorder %s82, 0
    %s84 = scalar_select %p83, %s82, 0
    %s85 = smul.addr %s84, 2
    %s86 = scalar_lea.vmem %s3, %s85
    %s87 = sadd.s32 0, 0
    %p88 = scmp.lt.s32.totalorder %s87, 0
    %s89 = scalar_select %p88, %s87, 0
    %s90 = sadd.s32 0, 0
    %p91 = scmp.lt.s32.totalorder %s90, 0
    %s92 = scalar_select %p91, %s90, 0
    %s93 = sadd.s32 0, 0
    %p94 = scmp.lt.s32.totalorder %s93, 0
    %s95 = scalar_select %p94, %s93, 0
    %p96 = scmp.lt.s32.totalorder %s95, 0
    %s97 = scalar_select %p96, %s95, 0
    %s98 = smul.addr %s97, 2
    %s99 = scalar_lea.vmem %s2, %s98
    %s100 = sadd.s32 0, 0
    %p101 = scmp.lt.s32.totalorder %s100, 0
    %s102 = scalar_select %p101, %s100, 0
    %s103 = sadd.s32 0, 0
    %p104 = scmp.lt.s32.totalorder %s103, 0
    %s105 = scalar_select %p104, %s103, 0
    %p106 = scmp.lt.s32.totalorder %s105, 0
    %s107 = scalar_select %p106, %s105, 0
    %s108 = smul.addr %s107, 2
    %s109 = scalar_lea.vmem %s3, %s108
    %s110 = sadd.s32 0, 0
    %p111 = scmp.lt.s32.totalorder %s110, 0
    %s112 = scalar_select %p111, %s110, 0
    %p113 = scmp.eq.s32.totalorder 0, 0
    // Predicated region
    $region26: #{objective_loss.1} parent=1 // pred_check
      %p114 = pneg %p113
    $region27: #{objective_loss.1} parent=1 // pred_check_branch
      %116 = sbr.rel (%p114) target = $region29
    $region28: #{objective_loss.1} parent=1 // pred_region
      %vm117 = vcmask 516096
      %118 = vst.msk [vmem:[%s4] sm:$0x1] %vm117, 0.0
      %vm119 = vcmask 253952
      %120 = vst.msk [vmem:[%s5] sm:$0x1] %vm119, 0.0
    $region29: #{objective_loss.1} parent=1 // pred_fallthru
      _
    %s121 = sadd.s32 0, 0
    %p122 = scmp.lt.s32.totalorder 0, 1
    %p123 = scmp.lt.s32.totalorder %s121, 1
    %p124 = pnand %p122, %p123
    %p125 = pneg %p124
    // Predicated region
    $region30: #{objective_loss.1} parent=1 // pred_check
      _
    $region31: #{objective_loss.1} parent=1 // pred_check_branch
      %127 = sbr.rel (%p124) target = $region33
    $region32: #{objective_loss.1} parent=1 // pred_region
      %v128 = vld [vmem:[#allocation4] sm:$0x3]
      %v129 = vld [vmem:[#allocation2] sm:$0x3]
      %v130 = vsub.f32 %v128, %v129
      %v131 = vmul.f32 %v130, %v130
      %v132 = vld [vmem:[%s4] sm:$0x1]
      %vm133 = vcmask 517120
      %v134 = vsel %vm133, %v131, 0.0
      %v135 = vrot.slane %v134, 4
      %v136 = vadd.f32 %v134, %v135
      %v137 = vrot.slane %v136, 2
      %v138 = vadd.f32 %v136, %v137
      %v139 = vrot.slane %v138, 1
      %v140 = vadd.f32 %v138, %v139
      %v141 = vadd.f32 %v132, %v140
      %vm142 = vcmask 516096
      %143 = vst.msk [vmem:[%s4] sm:$0x1] %vm142, %v141
      %v144 = vld [vmem:[%s99] sm:$0x3]
      %v145 = vld [vmem:[%s109] sm:$0x3]
      %v146 = vmul.f32 %v145, %v145
      %v147 = vmul.f32 %v144, %v144
      %v148 = vadd.f32 %v146, %v147
      %v149 = vmul.f32 %v148, 0.5
      %v150 = vlog2.pop %v145
      %v151 = vmul.f32 %v150, 0.6931472
      %v152 = vsub.f32 %v149, %v151
      %v153 = vld [vmem:[%s5] sm:$0x1]
      %vm154 = vcmask 254976
      %v155 = vsel %vm154, %v152, 0.0
      %v156 = vrot.slane %v155, 4
      %v157 = vadd.f32 %v155, %v156
      %v158 = vrot.slane %v157, 2
      %v159 = vadd.f32 %v157, %v158
      %v160 = vrot.slane %v159, 1
      %v161 = vadd.f32 %v159, %v160
      %v162 = vadd.f32 %v153, %v161
      %vm163 = vcmask 253952
      %164 = vst.msk [vmem:[%s5] sm:$0x1] %vm163, %v162
    $region33: #{objective_loss.1} parent=1 // pred_fallthru
      _
    // Predicated region
    $region34: #{objective_loss.1} parent=1 // pred_check
      _
    $region35: #{objective_loss.1} parent=1 // pred_check_branch
      %166 = sbr.rel (0) target = $region37
    $region36: #{objective_loss.1} parent=1 // pred_region
      _
    $region37: #{objective_loss.1} parent=1 // pred_fallthru
      _
    // Predicated region
    $region38: #{objective_loss.1} parent=1 // pred_check
      _
    $region39: #{objective_loss.1} parent=1 // pred_check_branch
      %168 = sbr.rel (0) target = $region41
    $region40: #{objective_loss.1} parent=1 // pred_region
      _
    $region41: #{objective_loss.1} parent=1 // pred_fallthru
      _
    // Predicated region
    $region42: #{objective_loss.1} parent=1 // pred_check
      _
    $region43: #{objective_loss.1} parent=1 // pred_check_branch
      %170 = sbr.rel (0) target = $region45
    $region44: #{objective_loss.1} parent=1 // pred_region
      _
    $region45: #{objective_loss.1} parent=1 // pred_fallthru
      _
    // Predicated region
    $region46: #{objective_loss.1} parent=1 // pred_check
      _
    $region47: #{objective_loss.1} parent=1 // pred_check_branch
      %172 = sbr.rel (0) target = $region49
    $region48: #{objective_loss.1} parent=1 // pred_region
      _
    $region49: #{objective_loss.1} parent=1 // pred_fallthru
      _
    %173 = vsyncpa [#allocation3], 1
    %174 = vsyncpa [#allocation5], 1

</llo_original>
